<compile_context>
chip_gen: v7x
topology: tpu7x:2x2x1
jax: 0.10.0
libtpu: 0.0.40
codegen_flags: <defaults>
</compile_context>

<pallas_src>
import jax
import jax.numpy as jnp
from jax.experimental import pallas as pl
from jax.experimental.pallas import tpu as pltpu


def _round_up(n: int, m: int) -> int:
    return ((n + m - 1) // m) * m


def _is_v7x() -> bool:
    """Best-effort detection of a 2-TensorCore (v7x) chip."""
    try:
        kind = jax.devices()[0].device_kind.lower()
        return ("v7" in kind) or ("tpu7" in kind)
    except Exception:
        return False


def prepare_local_logistic_params(weight, bias):
    """One-time layout prep, hoisted out of the per-call path.

    weight: (out_dim, in_dim)  ->  wt: (in_dim, out_dim)
    bias:   (out_dim,)         ->  b2: (1, out_dim)
    """
    wt = jnp.asarray(weight, jnp.float32).T
    b2 = jnp.asarray(bias, jnp.float32).reshape(1, -1)
    return wt, b2


def _local_logistic_kernel(x_ref, wt_ref, b_ref, o_ref):
    # x_ref : (tm, in_dim)   wt_ref : (in_dim, out_dim)
    # b_ref : (1, out_dim)   o_ref  : (tm, out_dim)
    y = jnp.dot(x_ref[...], wt_ref[...], preferred_element_type=jnp.float32)
    o_ref[...] = jnp.maximum(y + b_ref[...], 0.0).astype(o_ref.dtype)


def local_logistic_forward(x, wt, b2, *, tile_cap=512):
    """x: (B, in_dim) f32, wt: (in_dim, out_dim) f32, b2: (1, out_dim) f32."""
    B, in_dim = x.shape
    out_dim = wt.shape[1]
    x = x.astype(jnp.float32)

    # Tile selection: fewest/largest blocks on single-TC chips, >=2 blocks on
    # v7x (2 TensorCores) once the batch is big enough to split usefully.
    min_tiles = 2 if (_is_v7x() and B >= 256) else 1
    n_tiles = max(pl.cdiv(B, tile_cap), min_tiles)
    tm = _round_up(pl.cdiv(B, n_tiles), 8)
    b_padded = n_tiles * tm
    if b_padded != B:
        # At most n_tiles*8 - 1 dead rows (vs. up to ~70% before).
        x = jnp.pad(x, ((0, b_padded - B), (0, 0)))

    cost = pl.CostEstimate(
        flops=2 * b_padded * in_dim * out_dim,
        transcendentals=0,
        bytes_accessed=4 * (b_padded * in_dim        # x read
                            + in_dim * out_dim       # weight read
                            + out_dim                # bias read
                            + b_padded * out_dim),   # y write (narrow!)
    )

    out = pl.pallas_call(
        _local_logistic_kernel,
        out_shape=jax.ShapeDtypeStruct((b_padded, out_dim), jnp.float32),
        grid=(n_tiles,),
        in_specs=[
            pl.BlockSpec((tm, in_dim), lambda i: (i, 0)),
            pl.BlockSpec((in_dim, out_dim), lambda i: (0, 0)),
            pl.BlockSpec((1, out_dim), lambda i: (0, 0)),
        ],
        out_specs=pl.BlockSpec((tm, out_dim), lambda i: (i, 0)),
        compiler_params=pltpu.CompilerParams(
            dimension_semantics=("parallel",),
        ),
        cost_estimate=cost,
    )(x, wt, b2)

    return out if b_padded == B else out[:B]


if __name__ == "__main__":
    key = jax.random.PRNGKey(0)
    k_x, k_w, k_b, k_x2 = jax.random.split(key, 4)

    batch = 8
    input_dim = 13
    output_dim = 5

    # Deterministic parameter init (mimics nn.Linear uniform(-1/sqrt(in), 1/sqrt(in))).
    bound = 1.0 / (input_dim ** 0.5)
    weight = jax.random.uniform(k_w, (output_dim, input_dim),
                                minval=-bound, maxval=bound, dtype=jnp.float32)
    bias = jax.random.uniform(k_b, (output_dim,),
                              minval=-bound, maxval=bound, dtype=jnp.float32)

    # One-time param layout prep (hoisted out of every forward call).
    wt, b2 = prepare_local_logistic_params(weight, bias)

    # Small batch (single block path).
    x = jax.random.normal(k_x, (batch, input_dim), dtype=jnp.float32)
    out = jax.block_until_ready(local_logistic_forward(x, wt, b2))
    ref = jnp.maximum(x @ weight.T + bias, 0.0)
    assert out.shape == (batch, output_dim)
    assert jnp.allclose(out, ref, atol=1e-5, rtol=1e-5)

    # Larger batch (exercises balanced tiling + small remainder padding).
    x2 = jax.random.normal(k_x2, (600, input_dim), dtype=jnp.float32)
    out2 = jax.block_until_ready(local_logistic_forward(x2, wt, b2))
    ref2 = jnp.maximum(x2 @ weight.T + bias, 0.0)
    assert out2.shape == (600, output_dim)
    assert jnp.allclose(out2, ref2, atol=1e-5, rtol=1e-5)

    print("KERNEL_OK")
</pallas_src>

<mosaic_0001>
module attributes {stable_mosaic.version = 11 : i64} {
  func.func @_local_logistic_kernel(%arg0: i32, %arg1: memref<8x13xf32, #tpu.memory_space<vmem>>, %arg2: memref<13x5xf32, #tpu.memory_space<vmem>>, %arg3: memref<1x5xf32, #tpu.memory_space<vmem>>, %arg4: memref<8x5xf32, #tpu.memory_space<vmem>>) attributes {dimension_semantics = [#tpu.dimension_semantics<parallel>], iteration_bounds = array<i64: 1>, scalar_prefetch = 0 : i64, scratch_operands = 0 : i64, tpu.core_type = #tpu.core_type<tc>, window_params = [{transform_indices = @transform_0, window_bounds = array<i64: 8, 13>}, {pipeline_mode = #tpu.pipeline_mode<synchronous>, transform_indices = @transform_1, window_bounds = array<i64: 13, 5>}, {pipeline_mode = #tpu.pipeline_mode<synchronous>, transform_indices = @transform_2, window_bounds = array<i64: 1, 5>}, {transform_indices = @transform_3, window_bounds = array<i64: 8, 5>}]} {
    %c0 = arith.constant 0 : index
    %c0_0 = arith.constant 0 : index
    %0 = vector.load %arg1[%c0, %c0_0] : memref<8x13xf32, #tpu.memory_space<vmem>>, vector<8x13xf32>
    %c0_1 = arith.constant 0 : index
    %c0_2 = arith.constant 0 : index
    %1 = vector.load %arg2[%c0_1, %c0_2] : memref<13x5xf32, #tpu.memory_space<vmem>>, vector<13x5xf32>
    %cst = arith.constant dense<0.000000e+00> : vector<8x5xf32>
    %2 = tpu.matmul %0, %1, %cst {dimension_numbers = #tpu.dot_dimension_numbers<[1], [0], [0], [1], [0, 0, 1, 1], [], []>} : vector<8x13xf32>, vector<13x5xf32>, vector<8x5xf32> -> vector<8x5xf32>
    %c0_3 = arith.constant 0 : index
    %c0_4 = arith.constant 0 : index
    %3 = vector.load %arg3[%c0_3, %c0_4] : memref<1x5xf32, #tpu.memory_space<vmem>>, vector<1x5xf32>
    %4 = vector.broadcast %3 : vector<1x5xf32> to vector<8x5xf32>
    %5 = arith.addf %2, %4 : vector<8x5xf32>
    %cst_5 = arith.constant 0.000000e+00 : f32
    %6 = vector.broadcast %cst_5 : f32 to vector<8x5xf32>
    %7 = arith.maximumf %5, %6 : vector<8x5xf32>
    %c0_6 = arith.constant 0 : index
    %c0_7 = arith.constant 0 : index
    %8 = vector.load %arg4[%c0_6, %c0_7] : memref<8x5xf32, #tpu.memory_space<vmem>>, vector<8x5xf32>
    tpu.vector_store %arg4[%c0_6, %c0_7], %7 {strides = array<i32>} : memref<8x5xf32, #tpu.memory_space<vmem>>, vector<8x5xf32>,
    return
  }
  func.func @transform_0(%arg0: i32) -> (i32, i32) {
    %c0_i32 = arith.constant 0 : i32
    %c0_i32_0 = arith.constant 0 : i32
    return %arg0, %c0_i32 : i32, i32
  }
  func.func @transform_1(%arg0: i32) -> (i32, i32) {
    %c0_i32 = arith.constant 0 : i32
    %c0_i32_0 = arith.constant 0 : i32
    %c0_i32_1 = arith.constant 0 : i32
    return %c0_i32, %c0_i32_0 : i32, i32
  }
  func.func @transform_2(%arg0: i32) -> (i32, i32) {
    %c0_i32 = arith.constant 0 : i32
    %c0_i32_0 = arith.constant 0 : i32
    %c0_i32_1 = arith.constant 0 : i32
    return %c0_i32, %c0_i32_0 : i32, i32
  }
  func.func @transform_3(%arg0: i32) -> (i32, i32) {
    %c0_i32 = arith.constant 0 : i32
    %c0_i32_0 = arith.constant 0 : i32
    return %arg0, %c0_i32 : i32, i32
  }
}

</mosaic_0001>

<llo_original>
// kernel: tpu_custom_call.1
$region0: #{tpu_custom_call.1}
  #allocation0 [shape = 'u32[]', space=smem, size = 0x4, offset = 0x4, fixed_abs, tag = 'smem constant byte address 0x4 - core index']
  #allocation1 [shape = 'u32[144,128]{1,0:T(1,128)}', space=vmem, size = 0x12000, scoped, tag = 'internal scratch']
  %s0 = inlined_call_operand.vmem [shape: f32[8,13], index: 0, kind: input, shape index: {}]
  %s1 = inlined_call_operand.vmem [shape: f32[13,5], index: 1, kind: input, shape index: {}]
  %s2 = inlined_call_operand.vmem [shape: f32[1,5], index: 2, kind: input, shape index: {}]
  %s3 = inlined_call_operand.hbm [shape: f32[8,5], index: 3, kind: output, shape index: {}]
  %s4 = sld [smem:[#allocation0]]
  $region22: #{tpu_custom_call.1} parent=0
    _
  %s6 = ssub.s32 1, %s4
  %s7 = scalar_select 0, %s6, %s4
  $region1: #{tpu_custom_call.1} parent=0
    #allocation2 [shape = 'u8[4096]{0}', space=vmem, size = 0x1000, scoped, tag = 'output window, operand 0, single buffered']
    #allocation3 [shape = 's32[1]{0}', space=sflag, size = 0x4, scoped, tag = 'scoped memory for tpu_custom_call.1']
    %8 = vsyncpa [#allocation3], 0
    // Predicated region
    $region2: #{tpu_custom_call.1} parent=1 // pred_check
      _
    $region3: #{tpu_custom_call.1} parent=1 // pred_check_branch
      %10 = sbr.rel (0) target = $region5
    $region4: #{tpu_custom_call.1} parent=1 // pred_region
      _
    $region5: #{tpu_custom_call.1} parent=1 // pred_fallthru
      _
    // Predicated region
    $region6: #{tpu_custom_call.1} parent=1 // pred_check
      _
    $region7: #{tpu_custom_call.1} parent=1 // pred_check_branch
      %12 = sbr.rel (0) target = $region9
    $region8: #{tpu_custom_call.1} parent=1 // pred_region
      _
    $region9: #{tpu_custom_call.1} parent=1 // pred_fallthru
      _
    // Predicated region
    $region10: #{tpu_custom_call.1} parent=1 // pred_check
      _
    $region11: #{tpu_custom_call.1} parent=1 // pred_check_branch
      %14 = sbr.rel (0) target = $region13
    $region12: #{tpu_custom_call.1} parent=1 // pred_region
      _
    $region13: #{tpu_custom_call.1} parent=1 // pred_fallthru
      _
    %v15 = vld [vmem:[%s0] sm:$0xff]
    %v16 = vld [vmem:[%s1] sm:$0xff]
    %v17 = vld [vmem:[%s1 + $0x8] sm:$0x1f]
    %v18 = vld [vmem:[%s2] sm:$0x1]
    %v20 = vlaneseq
    %v21 = vshrl.u32 %v20, 7
    %v22 = vsub.s32 0, %v21
    %v23 = vrot.slane %v18, %v22
    %vm25 = vcmask 105472
    %v27 = vsel %vm25, %v15, 0
    %vm29 = vcmask 1044480
    %v31 = vsel %vm29, %v17, 0
    %33 = vmatprep.subr.mxu0 0.0
    %34 = vmatpush1.msra.mxu0 %v16
    %35 = vmatprep.subr.mxu0 0.0
    %36 = vmatpush1.msra.mxu0 %v31
    %37 = vmatprep.subr.mxu0 0.0
    %38 = vmatpush1.msra.mxu0 0.0
    %39 = vmatprep.subr.mxu0 0.0
    %40 = vmatpush1.msra.mxu0 0.0
    %41 = vmatprep.subr.mxu0 0.0
    %42 = vmatpush1.msra.mxu0 0.0
    %43 = vmatprep.subr.mxu0 0.0
    %44 = vmatpush1.msra.mxu0 0.0
    %45 = vmatprep.subr.mxu0 0.0
    %46 = vmatpush1.msra.mxu0 0.0
    %47 = vmatprep.subr.mxu0 0.0
    %48 = vmatpush1.msra.mxu0 0.0
    %49 = vmatprep.subr.mxu0 0.0
    %50 = vmatpush1.msra.mxu0 0.0
    %51 = vmatprep.subr.mxu0 0.0
    %52 = vmatpush1.msra.mxu0 0.0
    %53 = vmatprep.subr.mxu0 0.0
    %54 = vmatpush1.msra.mxu0 0.0
    %55 = vmatprep.subr.mxu0 0.0
    %56 = vmatpush1.msra.mxu0 0.0
    %57 = vmatprep.subr.mxu0 0.0
    %58 = vmatpush1.msra.mxu0 0.0
    %59 = vmatprep.subr.mxu0 0.0
    %60 = vmatpush1.msra.mxu0 0.0
    %61 = vmatprep.subr.mxu0 0.0
    %62 = vmatpush1.msra.mxu0 0.0
    %63 = vmatprep.subr.mxu0 0.0
    %64 = vmatpush1.msra.mxu0 0.0
    %65 = vmatprep.subr.mxu0 0.0
    %66 = vmatpush1.msra.mxu0 0.0
    %67 = vmatprep.subr.mxu0 0.0
    %68 = vmatpush1.msra.mxu0 0.0
    %69 = vmatprep.subr.mxu0 0.0
    %70 = vmatpush1.msra.mxu0 0.0
    %71 = vmatprep.subr.mxu0 0.0
    %72 = vmatpush1.msra.mxu0 0.0
    %73 = vmatprep.subr.mxu0 0.0
    %74 = vmatpush1.msra.mxu0 0.0
    %75 = vmatprep.subr.mxu0 0.0
    %76 = vmatpush1.msra.mxu0 0.0
    %77 = vmatprep.subr.mxu0 0.0
    %78 = vmatpush1.msra.mxu0 0.0
    %79 = vmatprep.subr.mxu0 0.0
    %80 = vmatpush1.msra.mxu0 0.0
    %81 = vmatprep.subr.mxu0 0.0
    %82 = vmatpush1.msra.mxu0 0.0
    %83 = vmatprep.subr.mxu0 0.0
    %84 = vmatpush1.msra.mxu0 0.0
    %85 = vmatprep.subr.mxu0 0.0
    %86 = vmatpush1.msra.mxu0 0.0
    %87 = vmatprep.subr.mxu0 0.0
    %88 = vmatpush1.msra.mxu0 0.0
    %89 = vmatprep.subr.mxu0 0.0
    %90 = vmatpush1.msra.mxu0 0.0
    %91 = vmatprep.subr.mxu0 0.0
    %92 = vmatpush1.msra.mxu0 0.0
    %93 = vmatprep.subr.mxu0 0.0
    %94 = vmatpush1.msra.mxu0 0.0
    %95 = vmatprep.subr.mxu0 0.0
    %96 = vmatpush1.msra.mxu0 0.0
    %97 = vmatprep.mubr.f32.mxu0 0.0
    %98 = vmatmul.mubr.f32.gmra.mrb[0].mxu0 %v27
    %v99 = vpop.f32.mrb[0].mxu0
    %v100 = vadd.f32 %v23, %v99
    %v101 = vpop.f32.mrb[0].mxu0
    %102 = vdwg.mxu0
    %v103 = vmax.f32 %v100, 0.0
    %vm104 = vcmask 39936
    %105 = vst.msk [vmem:[#allocation2] sm:$0xff] %vm104, %v103
    // Predicated region
    $region14: #{tpu_custom_call.1} parent=1 // pred_check
      _
    $region15: #{tpu_custom_call.1} parent=1 // pred_check_branch
      %107 = sbr.rel (0) target = $region17
    $region16: #{tpu_custom_call.1} parent=1 // pred_region
      %s109 = ssub.s32 128, 128
      %110 = vsyncadd [#allocation3], %s109
      %s112 = sshll.u32 [#allocation2], 4
      %s113 = int_to_ptr.vmem [resolvable:$true] %s112
      %115 = dma.vmem_to_hbm [thread:$0]  %s113, 128, %s3, [#allocation3]
    $region17: #{tpu_custom_call.1} parent=1 // pred_fallthru
      _
    // Predicated region
    $region18: #{tpu_custom_call.1} parent=1 // pred_check
      _
    $region19: #{tpu_custom_call.1} parent=1 // pred_check_branch
      %117 = sbr.rel (0) target = $region21
    $region20: #{tpu_custom_call.1} parent=1 // pred_region
      %118 = dma.done [#allocation3], 128
    $region21: #{tpu_custom_call.1} parent=1 // pred_fallthru
      _
    %119 = vsyncpa [#allocation3], 1

</llo_original>
